<compile_context>
chip_gen: v5e
topology: v5e:2x2
jax: 0.10.0
libtpu: 0.0.40
codegen_flags: <defaults>
</compile_context>

<pallas_src>
import jax
import jax.numpy as jnp
from jax.experimental import pallas as pl
from jax.experimental.pallas import tpu as pltpu

MIXTURE_DIM = 5
_INV_SQRT2 = 0.7071067811865476       # 1/sqrt(2)
_INV_SQRT_2PI = 0.3989422804014327    # 1/sqrt(2*pi)

_LANES = 128
_MAX_BLOCK_ROWS = 512                 # (512, 128) f32 = 256 KiB per buffer

# Offsets into the packed flat SMEM parameter array.
_HW = 0 * MIXTURE_DIM    # 0.5 * softmax(mixture_weights)
_MU = 1 * MIXTURE_DIM    # loc
_A  = 2 * MIXTURE_DIM    # inv_scale / sqrt(2)
_B  = 3 * MIXTURE_DIM    # -0.5 * inv_scale^2
_C  = 4 * MIXTURE_DIM    # w * inv_scale / sqrt(2*pi)


def _flow_kernel(p_ref, x_ref, z_ref, dz_ref):
    # p_ref: (5*K,) f32 packed scalars in SMEM
    # x_ref/z_ref/dz_ref: (block_rows, 128) f32 tiles in VMEM
    x = x_ref[...]
    # cdf_k = 0.5*(1 + erf(a_k*(x-mu_k))); weights sum to 1 so the 0.5*w_k
    # constants fold into a single 0.5 initializer for z.
    z = jnp.full_like(x, 0.5)
    dz = jnp.zeros_like(x)
    for k in range(MIXTURE_DIM):      # K=5, static unrolled loop of vector ops
        d = x - p_ref[_MU + k]
        z = z + p_ref[_HW + k] * jax.lax.erf(p_ref[_A + k] * d)
        dz = dz + p_ref[_C + k] * jnp.exp(p_ref[_B + k] * (d * d))
    z_ref[...] = z
    dz_ref[...] = dz


def normalizing_flow_of_cdfs(x, mixture_weights, loc, log_scale):
    """x: (N, 1) f32. Returns (z, dz), each (N,) f32."""
    assert x.ndim == 2 and x.shape[1] == 1
    n = x.shape[0]

    # Parameter setup (glue): all per-component scalar math hoisted here.
    weights = jax.nn.softmax(mixture_weights.astype(jnp.float32))
    inv_scale = jnp.exp(-log_scale.astype(jnp.float32))     # 1 / exp(log_scale)
    params = jnp.concatenate([
        0.5 * weights,                                       # _HW
        loc.astype(jnp.float32),                             # _MU
        inv_scale * _INV_SQRT2,                              # _A
        -0.5 * inv_scale * inv_scale,                        # _B
        weights * (_INV_SQRT_2PI * inv_scale),               # _C
    ])                                                       # (5*K,) f32

    # Tiling: lane-dense rows of 128; big blocks (up to 512 rows) to amortize
    # per-grid-step overhead. Only the ragged tail block gets zero-padded.
    rows = -(-n // _LANES)
    block_rows = min(_MAX_BLOCK_ROWS, -(-rows // 8) * 8)
    n_blocks = -(-rows // block_rows)
    padded_rows = n_blocks * block_rows
    padded = padded_rows * _LANES

    x_flat = x[:, 0].astype(jnp.float32)
    if padded != n:
        x_flat = jnp.pad(x_flat, (0, padded - n))            # tail pad only
    x2d = x_flat.reshape(padded_rows, _LANES)

    z2d, dz2d = pl.pallas_call(
        _flow_kernel,
        out_shape=(
            jax.ShapeDtypeStruct(x2d.shape, jnp.float32),
            jax.ShapeDtypeStruct(x2d.shape, jnp.float32),
        ),
        grid=(n_blocks,),
        in_specs=[
            pl.BlockSpec(memory_space=pltpu.MemorySpace.SMEM),   # packed params
            pl.BlockSpec((block_rows, _LANES), lambda i: (i, 0)),  # x tile
        ],
        out_specs=(
            pl.BlockSpec((block_rows, _LANES), lambda i: (i, 0)),
            pl.BlockSpec((block_rows, _LANES), lambda i: (i, 0)),
        ),
        compiler_params=pltpu.CompilerParams(
            dimension_semantics=("parallel",)),                 # v7x megacore
    )(params, x2d)

    z = z2d.reshape(-1)
    dz = dz2d.reshape(-1)
    if padded != n:
        z = z[:n]
        dz = dz[:n]
    return z, dz


def _reference(x, mixture_weights, loc, log_scale):
    # Pure-JAX mirror of the PyTorch forward (sanity check).
    weights = jax.nn.softmax(mixture_weights)
    scale = jnp.exp(log_scale)
    t = (x - loc) / scale                                    # (N, K)
    cdf = 0.5 * (1.0 + jax.lax.erf(t * _INV_SQRT2))
    pdf = jnp.exp(-0.5 * t * t) * (_INV_SQRT_2PI / scale)
    return cdf @ weights, pdf @ weights


if __name__ == "__main__":
    key = jax.random.PRNGKey(0)
    k_loc, k_ls, k_x = jax.random.split(key, 3)

    # Deterministic parameter init mirroring the module's __init__:
    #   mixture_weights = ones(K); loc, log_scale ~ Uniform(0, 1)
    mixture_weights = jnp.ones((MIXTURE_DIM,), jnp.float32)
    loc = jax.random.uniform(k_loc, (MIXTURE_DIM,), jnp.float32)
    log_scale = jax.random.uniform(k_ls, (MIXTURE_DIM,), jnp.float32)

    # Input: batch of 256 scalars shaped (N, 1), as the forward's broadcasting
    # against the (K,)-shaped Normal implies.
    x = jax.random.normal(k_x, (256, 1), jnp.float32)

    z, dz = normalizing_flow_of_cdfs(x, mixture_weights, loc, log_scale)
    z = jax.block_until_ready(z)
    dz = jax.block_until_ready(dz)

    z_ref, dz_ref = _reference(x, mixture_weights, loc, log_scale)
    assert z.shape == (x.shape[0],) and dz.shape == (x.shape[0],)
    assert jnp.allclose(z, z_ref, rtol=1e-3, atol=1e-3)
    assert jnp.allclose(dz, dz_ref, rtol=1e-3, atol=1e-3)

    print("KERNEL_OK")
</pallas_src>

<mosaic_0001>
module attributes {stable_mosaic.version = 11 : i64} {
  func.func @_flow_kernel(%arg0: i32, %arg1: memref<25xf32, #tpu.memory_space<smem>>, %arg2: memref<8x128xf32, #tpu.memory_space<vmem>>, %arg3: memref<8x128xf32, #tpu.memory_space<vmem>>, %arg4: memref<8x128xf32, #tpu.memory_space<vmem>>) attributes {dimension_semantics = [#tpu.dimension_semantics<parallel>], iteration_bounds = array<i64: 1>, scalar_prefetch = 0 : i64, scratch_operands = 0 : i64, tpu.core_type = #tpu.core_type<tc>, window_params = [{transform_indices = @transform_0, window_bounds = array<i64: 25>}, {transform_indices = @transform_1, window_bounds = array<i64: 8, 128>}, {transform_indices = @transform_2, window_bounds = array<i64: 8, 128>}, {transform_indices = @transform_3, window_bounds = array<i64: 8, 128>}]} {
    %c0 = arith.constant 0 : index
    %c0_0 = arith.constant 0 : index
    %0 = vector.load %arg2[%c0, %c0_0] : memref<8x128xf32, #tpu.memory_space<vmem>>, vector<8x128xf32>
    %cst = arith.constant 5.000000e-01 : f32
    %1 = vector.broadcast %cst : f32 to vector<8x128xf32>
    %cst_1 = arith.constant 0.000000e+00 : f32
    %2 = vector.broadcast %cst_1 : f32 to vector<8x128xf32>
    %c5 = arith.constant 5 : index
    %3 = memref.load %arg1[%c5] : memref<25xf32, #tpu.memory_space<smem>>
    %4 = vector.broadcast %3 : f32 to vector<8x128xf32>
    %5 = arith.subf %0, %4 : vector<8x128xf32>
    %c0_2 = arith.constant 0 : index
    %6 = memref.load %arg1[%c0_2] : memref<25xf32, #tpu.memory_space<smem>>
    %c10 = arith.constant 10 : index
    %7 = memref.load %arg1[%c10] : memref<25xf32, #tpu.memory_space<smem>>
    %8 = vector.broadcast %7 : f32 to vector<8x128xf32>
    %9 = arith.mulf %8, %5 : vector<8x128xf32>
    %10 = math.erf %9 : vector<8x128xf32>
    %11 = vector.broadcast %6 : f32 to vector<8x128xf32>
    %12 = arith.mulf %11, %10 : vector<8x128xf32>
    %13 = arith.addf %1, %12 : vector<8x128xf32>
    %c20 = arith.constant 20 : index
    %14 = memref.load %arg1[%c20] : memref<25xf32, #tpu.memory_space<smem>>
    %c15 = arith.constant 15 : index
    %15 = memref.load %arg1[%c15] : memref<25xf32, #tpu.memory_space<smem>>
    %16 = arith.mulf %5, %5 : vector<8x128xf32>
    %17 = vector.broadcast %15 : f32 to vector<8x128xf32>
    %18 = arith.mulf %17, %16 : vector<8x128xf32>
    %19 = math.exp %18 : vector<8x128xf32>
    %20 = vector.broadcast %14 : f32 to vector<8x128xf32>
    %21 = arith.mulf %20, %19 : vector<8x128xf32>
    %22 = arith.addf %2, %21 : vector<8x128xf32>
    %c6 = arith.constant 6 : index
    %23 = memref.load %arg1[%c6] : memref<25xf32, #tpu.memory_space<smem>>
    %24 = vector.broadcast %23 : f32 to vector<8x128xf32>
    %25 = arith.subf %0, %24 : vector<8x128xf32>
    %c1 = arith.constant 1 : index
    %26 = memref.load %arg1[%c1] : memref<25xf32, #tpu.memory_space<smem>>
    %c11 = arith.constant 11 : index
    %27 = memref.load %arg1[%c11] : memref<25xf32, #tpu.memory_space<smem>>
    %28 = vector.broadcast %27 : f32 to vector<8x128xf32>
    %29 = arith.mulf %28, %25 : vector<8x128xf32>
    %30 = math.erf %29 : vector<8x128xf32>
    %31 = vector.broadcast %26 : f32 to vector<8x128xf32>
    %32 = arith.mulf %31, %30 : vector<8x128xf32>
    %33 = arith.addf %13, %32 : vector<8x128xf32>
    %c21 = arith.constant 21 : index
    %34 = memref.load %arg1[%c21] : memref<25xf32, #tpu.memory_space<smem>>
    %c16 = arith.constant 16 : index
    %35 = memref.load %arg1[%c16] : memref<25xf32, #tpu.memory_space<smem>>
    %36 = arith.mulf %25, %25 : vector<8x128xf32>
    %37 = vector.broadcast %35 : f32 to vector<8x128xf32>
    %38 = arith.mulf %37, %36 : vector<8x128xf32>
    %39 = math.exp %38 : vector<8x128xf32>
    %40 = vector.broadcast %34 : f32 to vector<8x128xf32>
    %41 = arith.mulf %40, %39 : vector<8x128xf32>
    %42 = arith.addf %22, %41 : vector<8x128xf32>
    %c7 = arith.constant 7 : index
    %43 = memref.load %arg1[%c7] : memref<25xf32, #tpu.memory_space<smem>>
    %44 = vector.broadcast %43 : f32 to vector<8x128xf32>
    %45 = arith.subf %0, %44 : vector<8x128xf32>
    %c2 = arith.constant 2 : index
    %46 = memref.load %arg1[%c2] : memref<25xf32, #tpu.memory_space<smem>>
    %c12 = arith.constant 12 : index
    %47 = memref.load %arg1[%c12] : memref<25xf32, #tpu.memory_space<smem>>
    %48 = vector.broadcast %47 : f32 to vector<8x128xf32>
    %49 = arith.mulf %48, %45 : vector<8x128xf32>
    %50 = math.erf %49 : vector<8x128xf32>
    %51 = vector.broadcast %46 : f32 to vector<8x128xf32>
    %52 = arith.mulf %51, %50 : vector<8x128xf32>
    %53 = arith.addf %33, %52 : vector<8x128xf32>
    %c22 = arith.constant 22 : index
    %54 = memref.load %arg1[%c22] : memref<25xf32, #tpu.memory_space<smem>>
    %c17 = arith.constant 17 : index
    %55 = memref.load %arg1[%c17] : memref<25xf32, #tpu.memory_space<smem>>
    %56 = arith.mulf %45, %45 : vector<8x128xf32>
    %57 = vector.broadcast %55 : f32 to vector<8x128xf32>
    %58 = arith.mulf %57, %56 : vector<8x128xf32>
    %59 = math.exp %58 : vector<8x128xf32>
    %60 = vector.broadcast %54 : f32 to vector<8x128xf32>
    %61 = arith.mulf %60, %59 : vector<8x128xf32>
    %62 = arith.addf %42, %61 : vector<8x128xf32>
    %c8 = arith.constant 8 : index
    %63 = memref.load %arg1[%c8] : memref<25xf32, #tpu.memory_space<smem>>
    %64 = vector.broadcast %63 : f32 to vector<8x128xf32>
    %65 = arith.subf %0, %64 : vector<8x128xf32>
    %c3 = arith.constant 3 : index
    %66 = memref.load %arg1[%c3] : memref<25xf32, #tpu.memory_space<smem>>
    %c13 = arith.constant 13 : index
    %67 = memref.load %arg1[%c13] : memref<25xf32, #tpu.memory_space<smem>>
    %68 = vector.broadcast %67 : f32 to vector<8x128xf32>
    %69 = arith.mulf %68, %65 : vector<8x128xf32>
    %70 = math.erf %69 : vector<8x128xf32>
    %71 = vector.broadcast %66 : f32 to vector<8x128xf32>
    %72 = arith.mulf %71, %70 : vector<8x128xf32>
    %73 = arith.addf %53, %72 : vector<8x128xf32>
    %c23 = arith.constant 23 : index
    %74 = memref.load %arg1[%c23] : memref<25xf32, #tpu.memory_space<smem>>
    %c18 = arith.constant 18 : index
    %75 = memref.load %arg1[%c18] : memref<25xf32, #tpu.memory_space<smem>>
    %76 = arith.mulf %65, %65 : vector<8x128xf32>
    %77 = vector.broadcast %75 : f32 to vector<8x128xf32>
    %78 = arith.mulf %77, %76 : vector<8x128xf32>
    %79 = math.exp %78 : vector<8x128xf32>
    %80 = vector.broadcast %74 : f32 to vector<8x128xf32>
    %81 = arith.mulf %80, %79 : vector<8x128xf32>
    %82 = arith.addf %62, %81 : vector<8x128xf32>
    %c9 = arith.constant 9 : index
    %83 = memref.load %arg1[%c9] : memref<25xf32, #tpu.memory_space<smem>>
    %84 = vector.broadcast %83 : f32 to vector<8x128xf32>
    %85 = arith.subf %0, %84 : vector<8x128xf32>
    %c4 = arith.constant 4 : index
    %86 = memref.load %arg1[%c4] : memref<25xf32, #tpu.memory_space<smem>>
    %c14 = arith.constant 14 : index
    %87 = memref.load %arg1[%c14] : memref<25xf32, #tpu.memory_space<smem>>
    %88 = vector.broadcast %87 : f32 to vector<8x128xf32>
    %89 = arith.mulf %88, %85 : vector<8x128xf32>
    %90 = math.erf %89 : vector<8x128xf32>
    %91 = vector.broadcast %86 : f32 to vector<8x128xf32>
    %92 = arith.mulf %91, %90 : vector<8x128xf32>
    %93 = arith.addf %73, %92 : vector<8x128xf32>
    %c24 = arith.constant 24 : index
    %94 = memref.load %arg1[%c24] : memref<25xf32, #tpu.memory_space<smem>>
    %c19 = arith.constant 19 : index
    %95 = memref.load %arg1[%c19] : memref<25xf32, #tpu.memory_space<smem>>
    %96 = arith.mulf %85, %85 : vector<8x128xf32>
    %97 = vector.broadcast %95 : f32 to vector<8x128xf32>
    %98 = arith.mulf %97, %96 : vector<8x128xf32>
    %99 = math.exp %98 : vector<8x128xf32>
    %100 = vector.broadcast %94 : f32 to vector<8x128xf32>
    %101 = arith.mulf %100, %99 : vector<8x128xf32>
    %102 = arith.addf %82, %101 : vector<8x128xf32>
    %c0_3 = arith.constant 0 : index
    %c0_4 = arith.constant 0 : index
    %103 = vector.load %arg3[%c0_3, %c0_4] : memref<8x128xf32, #tpu.memory_space<vmem>>, vector<8x128xf32>
    tpu.vector_store %arg3[%c0_3, %c0_4], %93 {strides = array<i32>} : memref<8x128xf32, #tpu.memory_space<vmem>>, vector<8x128xf32>,
    %c0_5 = arith.constant 0 : index
    %c0_6 = arith.constant 0 : index
    %104 = vector.load %arg4[%c0_5, %c0_6] : memref<8x128xf32, #tpu.memory_space<vmem>>, vector<8x128xf32>
    tpu.vector_store %arg4[%c0_5, %c0_6], %102 {strides = array<i32>} : memref<8x128xf32, #tpu.memory_space<vmem>>, vector<8x128xf32>,
    return
  }
  func.func @transform_0(%arg0: i32) -> i32 {
    %c0_i32 = arith.constant 0 : i32
    %c0_i32_0 = arith.constant 0 : i32
    return %c0_i32 : i32
  }
  func.func @transform_1(%arg0: i32) -> (i32, i32) {
    %c0_i32 = arith.constant 0 : i32
    %c0_i32_0 = arith.constant 0 : i32
    return %arg0, %c0_i32 : i32, i32
  }
  func.func @transform_2(%arg0: i32) -> (i32, i32) {
    %c0_i32 = arith.constant 0 : i32
    %c0_i32_0 = arith.constant 0 : i32
    return %arg0, %c0_i32 : i32, i32
  }
  func.func @transform_3(%arg0: i32) -> (i32, i32) {
    %c0_i32 = arith.constant 0 : i32
    %c0_i32_0 = arith.constant 0 : i32
    return %arg0, %c0_i32 : i32, i32
  }
}

</mosaic_0001>

<llo_original>
// kernel: tpu_custom_call.1
$region0: #{tpu_custom_call.1}
  #allocation0 [shape = 'u32[]', space=smem, size = 0x4, offset = 0x4, fixed_abs, tag = 'smem constant byte address 0x4 - core index']
  #allocation1 [shape = 'u32[72,128]{1,0:T(1,128)}', space=vmem, size = 0x9000, scoped, tag = 'internal scratch']
  %s0 = inlined_call_operand.hbm [shape: f32[25], index: 0, kind: input, shape index: {}]
  %s1 = inlined_call_operand.hbm [shape: f32[8,128], index: 1, kind: input, shape index: {}]
  %s2 = inlined_call_operand.hbm [shape: f32[8,128], index: 2, kind: output, shape index: {0}]
  %s3 = inlined_call_operand.hbm [shape: f32[8,128], index: 3, kind: output, shape index: {1}]
  %4 = xla_tuple %s2, %s3
  %s5 = sld [smem:[#allocation0]]
  $region34: #{tpu_custom_call.1} parent=0
    _
  %s7 = ssub.s32 1, %s5
  %s8 = scalar_select 0, %s7, %s5
  $region1: #{tpu_custom_call.1} parent=0
    #allocation2 [shape = 'u8[512]{0}', space=smem, size = 0x200, scoped, tag = 'input window, operand 0, single buffered']
    #allocation3 [shape = 's32[1]{0}', space=sflag, size = 0x4, scoped, tag = 'scoped memory for tpu_custom_call.1']
    #allocation4 [shape = 's32[1]{0}', space=sflag, size = 0x4, scoped, tag = 'scoped memory for tpu_custom_call.1']
    #allocation5 [shape = 's32[1]{0}', space=sflag, size = 0x4, scoped, tag = 'scoped memory for tpu_custom_call.1']
    #allocation6 [shape = 'u8[4096]{0}', space=vmem, size = 0x1000, scoped, tag = 'input window, operand 1, single buffered']
    #allocation7 [shape = 'u8[4096]{0}', space=vmem, size = 0x1000, scoped, tag = 'output window, operand 0, single buffered']
    #allocation8 [shape = 'u8[4096]{0}', space=vmem, size = 0x1000, scoped, tag = 'output window, operand 1, single buffered']
    #allocation9 [shape = 's32[1]{0}', space=sflag, size = 0x4, scoped, tag = 'scoped memory for tpu_custom_call.1']
    %9 = vsyncpa [#allocation5], 0
    %10 = vsyncpa [#allocation3], 0
    %11 = vsyncpa [#allocation4], 0
    %12 = vsyncpa [#allocation9], 0
    // Predicated region
    $region2: #{tpu_custom_call.1} parent=1 // pred_check
      _
    $region3: #{tpu_custom_call.1} parent=1 // pred_check_branch
      %14 = sbr.rel (0) target = $region5
    $region4: #{tpu_custom_call.1} parent=1 // pred_region
      %16 = vsyncadd [#allocation5], 0
      %s18 = sshll.u32 %s0, 4
      %s19 = int_to_ptr.hbm [resolvable:$true] %s18
      %21 = dma.hbm_to_smem %s19, 16, [#allocation2], [#allocation5]
    $region5: #{tpu_custom_call.1} parent=1 // pred_fallthru
      _
    // Predicated region
    $region6: #{tpu_custom_call.1} parent=1 // pred_check
      _
    $region7: #{tpu_custom_call.1} parent=1 // pred_check_branch
      %23 = sbr.rel (0) target = $region9
    $region8: #{tpu_custom_call.1} parent=1 // pred_region
      %25 = vsyncadd [#allocation3], 0
      %s27 = sshll.u32 %s1, 4
      %s28 = int_to_ptr.hbm [resolvable:$true] %s27
      %s29 = sshll.u32 [#allocation6], 4
      %s30 = int_to_ptr.vmem [resolvable:$true] %s29
      %32 = dma.hbm_to_vmem [thread:$0]  %s28, 128, %s30, [#allocation3]
    $region9: #{tpu_custom_call.1} parent=1 // pred_fallthru
      _
    // Predicated region
    $region10: #{tpu_custom_call.1} parent=1 // pred_check
      _
    $region11: #{tpu_custom_call.1} parent=1 // pred_check_branch
      %34 = sbr.rel (0) target = $region13
    $region12: #{tpu_custom_call.1} parent=1 // pred_region
      %36 = dma.done [#allocation5], 16
    $region13: #{tpu_custom_call.1} parent=1 // pred_fallthru
      _
    // Predicated region
    $region14: #{tpu_custom_call.1} parent=1 // pred_check
      _
    $region15: #{tpu_custom_call.1} parent=1 // pred_check_branch
      %38 = sbr.rel (0) target = $region17
    $region16: #{tpu_custom_call.1} parent=1 // pred_region
      %40 = dma.done [#allocation3], 128
    $region17: #{tpu_custom_call.1} parent=1 // pred_fallthru
      _
    %41 = sfence
    %v42 = vld [vmem:[#allocation6] sm:$0xff]
    %s43 = sld [smem:[#allocation2 + $0x5]]
    %v44 = vstv %s43
    %v45 = vsub.f32 %v42, %v44
    %s46 = sld [smem:[#allocation2]]
    %s47 = sld [smem:[#allocation2 + $0xa]]
    %v48 = vstv %s47
    %v49 = vmul.f32 %v48, %v45
    %v50 = vmul.f32 %v49, %v49
    %v51 = vmin.f32 16.0, %v50
    %v52 = vmul.f32 %v51, 2.1237322e-06
    %v53 = vadd.f32 %v52, 0.00028619796
    %v54 = vmul.f32 %v51, %v53
    %v55 = vadd.f32 %v54, 0.0036580483
    %v56 = vmul.f32 %v51, %v55
    %v57 = vadd.f32 %v56, 0.05243302
    %v58 = vmul.f32 %v51, %v57
    %v59 = vadd.f32 %v58, 0.18741608
    %v60 = vmul.f32 %v51, %v59
    %v61 = vadd.f32 %v60, 1.1283791
    %v62 = vmul.f32 %v49, %v61
    %v63 = vmul.f32 %v51, 3.8918573e-05
    %v64 = vadd.f32 %v63, 0.001143296
    %v65 = vmul.f32 %v51, %v64
    %v66 = vadd.f32 %v65, 0.014752088
    %v67 = vmul.f32 %v51, %v66
    %v68 = vadd.f32 %v67, 0.112945676
    %v69 = vmul.f32 %v51, %v68
    %v70 = vadd.f32 %v69, 0.4994258
    %v71 = vmul.f32 %v51, %v70
    %v72 = vadd.f32 %v71, 1.0
    %v73 = vrcp.pop %v72
    %v74 = vmul.f32 %v72, %v73
    %v75 = vsub.f32 1.0, %v74
    %v76 = vmul.f32 %v73, %v75
    %v77 = vadd.f32 %v73, %v76
    %vm78 = vweird.f32 %v72
    %vm79 = vweird.f32 %v73
    %vm80 = vmor %vm78, %vm79
    %v81 = vsel %vm80, %v73, %v77
    %v82 = vand.u32 2147483647, %v72
    %vm83 = vcmp.eq.f32.partialorder %v82, 8.507059e+37
    %v84 = vand.u32 %v72, 2147483648
    %v85 = vor.u32 1.1754944e-38, %v84
    %v86 = vsel %vm83, %v85, %v81
    %v87 = vmul.f32 %v62, %v86
    %v88 = vmin.f32 %v87, 1.0
    %v89 = vmax.f32 %v88, -1.0
    %v90 = vstv %s46
    %v91 = vmul.f32 %v90, %v89
    %v92 = vadd.f32 %v91, 0.5
    %s93 = sld [smem:[#allocation2 + $0x14]]
    %s94 = sld [smem:[#allocation2 + $0xf]]
    %v95 = vmul.f32 %v45, %v45
    %v96 = vstv %s94
    %v97 = vmul.f32 %v96, %v95
    %v98 = vmul.f32 %v97, 1.442695
    %v99 = vpow.pop %v98
    %v100 = vstv %s93
    %v101 = vmul.f32 %v100, %v99
    %v102 = vadd.f32 %v101, 0.0
    %s103 = sld [smem:[#allocation2 + $0x6]]
    %v104 = vstv %s103
    %v105 = vsub.f32 %v42, %v104
    %s106 = sld [smem:[#allocation2 + $0x1]]
    %s107 = sld [smem:[#allocation2 + $0xb]]
    %v108 = vstv %s107
    %v109 = vmul.f32 %v108, %v105
    %v110 = vmul.f32 %v109, %v109
    %v111 = vmin.f32 16.0, %v110
    %v112 = vmul.f32 %v111, 2.1237322e-06
    %v113 = vadd.f32 %v112, 0.00028619796
    %v114 = vmul.f32 %v111, %v113
    %v115 = vadd.f32 %v114, 0.0036580483
    %v116 = vmul.f32 %v111, %v115
    %v117 = vadd.f32 %v116, 0.05243302
    %v118 = vmul.f32 %v111, %v117
    %v119 = vadd.f32 %v118, 0.18741608
    %v120 = vmul.f32 %v111, %v119
    %v121 = vadd.f32 %v120, 1.1283791
    %v122 = vmul.f32 %v109, %v121
    %v123 = vmul.f32 %v111, 3.8918573e-05
    %v124 = vadd.f32 %v123, 0.001143296
    %v125 = vmul.f32 %v111, %v124
    %v126 = vadd.f32 %v125, 0.014752088
    %v127 = vmul.f32 %v111, %v126
    %v128 = vadd.f32 %v127, 0.112945676
    %v129 = vmul.f32 %v111, %v128
    %v130 = vadd.f32 %v129, 0.4994258
    %v131 = vmul.f32 %v111, %v130
    %v132 = vadd.f32 %v131, 1.0
    %v133 = vrcp.pop %v132
    %v134 = vmul.f32 %v132, %v133
    %v135 = vsub.f32 1.0, %v134
    %v136 = vmul.f32 %v133, %v135
    %v137 = vadd.f32 %v133, %v136
    %vm138 = vweird.f32 %v132
    %vm139 = vweird.f32 %v133
    %vm140 = vmor %vm138, %vm139
    %v141 = vsel %vm140, %v133, %v137
    %v142 = vand.u32 2147483647, %v132
    %vm143 = vcmp.eq.f32.partialorder %v142, 8.507059e+37
    %v144 = vand.u32 %v132, 2147483648
    %v145 = vor.u32 1.1754944e-38, %v144
    %v146 = vsel %vm143, %v145, %v141
    %v147 = vmul.f32 %v122, %v146
    %v148 = vmin.f32 %v147, 1.0
    %v149 = vmax.f32 %v148, -1.0
    %v150 = vstv %s106
    %v151 = vmul.f32 %v150, %v149
    %v152 = vadd.f32 %v92, %v151
    %s153 = sld [smem:[#allocation2 + $0x15]]
    %s154 = sld [smem:[#allocation2 + $0x10]]
    %v155 = vmul.f32 %v105, %v105
    %v156 = vstv %s154
    %v157 = vmul.f32 %v156, %v155
    %v158 = vmul.f32 %v157, 1.442695
    %v159 = vpow.pop %v158
    %v160 = vstv %s153
    %v161 = vmul.f32 %v160, %v159
    %v162 = vadd.f32 %v102, %v161
    %s163 = sld [smem:[#allocation2 + $0x7]]
    %v164 = vstv %s163
    %v165 = vsub.f32 %v42, %v164
    %s166 = sld [smem:[#allocation2 + $0x2]]
    %s167 = sld [smem:[#allocation2 + $0xc]]
    %v168 = vstv %s167
    %v169 = vmul.f32 %v168, %v165
    %v170 = vmul.f32 %v169, %v169
    %v171 = vmin.f32 16.0, %v170
    %v172 = vmul.f32 %v171, 2.1237322e-06
    %v173 = vadd.f32 %v172, 0.00028619796
    %v174 = vmul.f32 %v171, %v173
    %v175 = vadd.f32 %v174, 0.0036580483
    %v176 = vmul.f32 %v171, %v175
    %v177 = vadd.f32 %v176, 0.05243302
    %v178 = vmul.f32 %v171, %v177
    %v179 = vadd.f32 %v178, 0.18741608
    %v180 = vmul.f32 %v171, %v179
    %v181 = vadd.f32 %v180, 1.1283791
    %v182 = vmul.f32 %v169, %v181
    %v183 = vmul.f32 %v171, 3.8918573e-05
    %v184 = vadd.f32 %v183, 0.001143296
    %v185 = vmul.f32 %v171, %v184
    %v186 = vadd.f32 %v185, 0.014752088
    %v187 = vmul.f32 %v171, %v186
    %v188 = vadd.f32 %v187, 0.112945676
    %v189 = vmul.f32 %v171, %v188
    %v190 = vadd.f32 %v189, 0.4994258
    %v191 = vmul.f32 %v171, %v190
    %v192 = vadd.f32 %v191, 1.0
    %v193 = vrcp.pop %v192
    %v194 = vmul.f32 %v192, %v193
    %v195 = vsub.f32 1.0, %v194
    %v196 = vmul.f32 %v193, %v195
    %v197 = vadd.f32 %v193, %v196
    %vm198 = vweird.f32 %v192
    %vm199 = vweird.f32 %v193
    %vm200 = vmor %vm198, %vm199
    %v201 = vsel %vm200, %v193, %v197
    %v202 = vand.u32 2147483647, %v192
    %vm203 = vcmp.eq.f32.partialorder %v202, 8.507059e+37
    %v204 = vand.u32 %v192, 2147483648
    %v205 = vor.u32 1.1754944e-38, %v204
    %v206 = vsel %vm203, %v205, %v201
    %v207 = vmul.f32 %v182, %v206
    %v208 = vmin.f32 %v207, 1.0
    %v209 = vmax.f32 %v208, -1.0
    %v210 = vstv %s166
    %v211 = vmul.f32 %v210, %v209
    %v212 = vadd.f32 %v152, %v211
    %s213 = sld [smem:[#allocation2 + $0x16]]
    %s214 = sld [smem:[#allocation2 + $0x11]]
    %v215 = vmul.f32 %v165, %v165
    %v216 = vstv %s214
    %v217 = vmul.f32 %v216, %v215
    %v218 = vmul.f32 %v217, 1.442695
    %v219 = vpow.pop %v218
    %v220 = vstv %s213
    %v221 = vmul.f32 %v220, %v219
    %v222 = vadd.f32 %v162, %v221
    %s223 = sld [smem:[#allocation2 + $0x8]]
    %v224 = vstv %s223
    %v225 = vsub.f32 %v42, %v224
    %s226 = sld [smem:[#allocation2 + $0x3]]
    %s227 = sld [smem:[#allocation2 + $0xd]]
    %v228 = vstv %s227
    %v229 = vmul.f32 %v228, %v225
    %v230 = vmul.f32 %v229, %v229
    %v231 = vmin.f32 16.0, %v230
    %v232 = vmul.f32 %v231, 2.1237322e-06
    %v233 = vadd.f32 %v232, 0.00028619796
    %v234 = vmul.f32 %v231, %v233
    %v235 = vadd.f32 %v234, 0.0036580483
    %v236 = vmul.f32 %v231, %v235
    %v237 = vadd.f32 %v236, 0.05243302
    %v238 = vmul.f32 %v231, %v237
    %v239 = vadd.f32 %v238, 0.18741608
    %v240 = vmul.f32 %v231, %v239
    %v241 = vadd.f32 %v240, 1.1283791
    %v242 = vmul.f32 %v229, %v241
    %v243 = vmul.f32 %v231, 3.8918573e-05
    %v244 = vadd.f32 %v243, 0.001143296
    %v245 = vmul.f32 %v231, %v244
    %v246 = vadd.f32 %v245, 0.014752088
    %v247 = vmul.f32 %v231, %v246
    %v248 = vadd.f32 %v247, 0.112945676
    %v249 = vmul.f32 %v231, %v248
    %v250 = vadd.f32 %v249, 0.4994258
    %v251 = vmul.f32 %v231, %v250
    %v252 = vadd.f32 %v251, 1.0
    %v253 = vrcp.pop %v252
    %v254 = vmul.f32 %v252, %v253
    %v255 = vsub.f32 1.0, %v254
    %v256 = vmul.f32 %v253, %v255
    %v257 = vadd.f32 %v253, %v256
    %vm258 = vweird.f32 %v252
    %vm259 = vweird.f32 %v253
    %vm260 = vmor %vm258, %vm259
    %v261 = vsel %vm260, %v253, %v257
    %v262 = vand.u32 2147483647, %v252
    %vm263 = vcmp.eq.f32.partialorder %v262, 8.507059e+37
    %v264 = vand.u32 %v252, 2147483648
    %v265 = vor.u32 1.1754944e-38, %v264
    %v266 = vsel %vm263, %v265, %v261
    %v267 = vmul.f32 %v242, %v266
    %v268 = vmin.f32 %v267, 1.0
    %v269 = vmax.f32 %v268, -1.0
    %v270 = vstv %s226
    %v271 = vmul.f32 %v270, %v269
    %v272 = vadd.f32 %v212, %v271
    %s273 = sld [smem:[#allocation2 + $0x17]]
    %s274 = sld [smem:[#allocation2 + $0x12]]
    %v275 = vmul.f32 %v225, %v225
    %v276 = vstv %s274
    %v277 = vmul.f32 %v276, %v275
    %v278 = vmul.f32 %v277, 1.442695
    %v279 = vpow.pop %v278
    %v280 = vstv %s273
    %v281 = vmul.f32 %v280, %v279
    %v282 = vadd.f32 %v222, %v281
    %s283 = sld [smem:[#allocation2 + $0x9]]
    %v284 = vstv %s283
    %v285 = vsub.f32 %v42, %v284
    %s286 = sld [smem:[#allocation2 + $0x4]]
    %s287 = sld [smem:[#allocation2 + $0xe]]
    %v288 = vstv %s287
    %v289 = vmul.f32 %v288, %v285
    %v290 = vmul.f32 %v289, %v289
    %v291 = vmin.f32 16.0, %v290
    %v292 = vmul.f32 %v291, 2.1237322e-06
    %v293 = vadd.f32 %v292, 0.00028619796
    %v294 = vmul.f32 %v291, %v293
    %v295 = vadd.f32 %v294, 0.0036580483
    %v296 = vmul.f32 %v291, %v295
    %v297 = vadd.f32 %v296, 0.05243302
    %v298 = vmul.f32 %v291, %v297
    %v299 = vadd.f32 %v298, 0.18741608
    %v300 = vmul.f32 %v291, %v299
    %v301 = vadd.f32 %v300, 1.1283791
    %v302 = vmul.f32 %v289, %v301
    %v303 = vmul.f32 %v291, 3.8918573e-05
    %v304 = vadd.f32 %v303, 0.001143296
    %v305 = vmul.f32 %v291, %v304
    %v306 = vadd.f32 %v305, 0.014752088
    %v307 = vmul.f32 %v291, %v306
    %v308 = vadd.f32 %v307, 0.112945676
    %v309 = vmul.f32 %v291, %v308
    %v310 = vadd.f32 %v309, 0.4994258
    %v311 = vmul.f32 %v291, %v310
    %v312 = vadd.f32 %v311, 1.0
    %v313 = vrcp.pop %v312
    %v314 = vmul.f32 %v312, %v313
    %v315 = vsub.f32 1.0, %v314
    %v316 = vmul.f32 %v313, %v315
    %v317 = vadd.f32 %v313, %v316
    %vm318 = vweird.f32 %v312
    %vm319 = vweird.f32 %v313
    %vm320 = vmor %vm318, %vm319
    %v321 = vsel %vm320, %v313, %v317
    %v322 = vand.u32 2147483647, %v312
    %vm323 = vcmp.eq.f32.partialorder %v322, 8.507059e+37
    %v324 = vand.u32 %v312, 2147483648
    %v325 = vor.u32 1.1754944e-38, %v324
    %v326 = vsel %vm323, %v325, %v321
    %v327 = vmul.f32 %v302, %v326
    %v328 = vmin.f32 %v327, 1.0
    %v329 = vmax.f32 %v328, -1.0
    %v330 = vstv %s286
    %v331 = vmul.f32 %v330, %v329
    %v332 = vadd.f32 %v272, %v331
    %s333 = sld [smem:[#allocation2 + $0x18]]
    %s334 = sld [smem:[#allocation2 + $0x13]]
    %v335 = vmul.f32 %v285, %v285
    %v336 = vstv %s334
    %v337 = vmul.f32 %v336, %v335
    %v338 = vmul.f32 %v337, 1.442695
    %v339 = vpow.pop %v338
    %v340 = vstv %s333
    %v341 = vmul.f32 %v340, %v339
    %v342 = vadd.f32 %v282, %v341
    %343 = vst [vmem:[#allocation7] sm:$0xff] %v332
    %344 = vst [vmem:[#allocation8] sm:$0xff] %v342
    // Predicated region
    $region18: #{tpu_custom_call.1} parent=1 // pred_check
      _
    $region19: #{tpu_custom_call.1} parent=1 // pred_check_branch
      %346 = sbr.rel (0) target = $region21
    $region20: #{tpu_custom_call.1} parent=1 // pred_region
      %348 = vsyncadd [#allocation4], 0
      %s350 = sshll.u32 [#allocation7], 4
      %s351 = int_to_ptr.vmem [resolvable:$true] %s350
      %s352 = sshll.u32 %s2, 4
      %s353 = int_to_ptr.hbm [resolvable:$true] %s352
      %355 = dma.vmem_to_hbm [thread:$0]  %s351, 128, %s353, [#allocation4]
    $region21: #{tpu_custom_call.1} parent=1 // pred_fallthru
      _
    // Predicated region
    $region22: #{tpu_custom_call.1} parent=1 // pred_check
      _
    $region23: #{tpu_custom_call.1} parent=1 // pred_check_branch
      %357 = sbr.rel (0) target = $region25
    $region24: #{tpu_custom_call.1} parent=1 // pred_region
      %359 = vsyncadd [#allocation9], 0
      %s361 = sshll.u32 [#allocation8], 4
      %s362 = int_to_ptr.vmem [resolvable:$true] %s361
      %s363 = sshll.u32 %s3, 4
      %s364 = int_to_ptr.hbm [resolvable:$true] %s363
      %366 = dma.vmem_to_hbm [thread:$0]  %s362, 128, %s364, [#allocation9]
    $region25: #{tpu_custom_call.1} parent=1 // pred_fallthru
      _
    // Predicated region
    $region26: #{tpu_custom_call.1} parent=1 // pred_check
      _
    $region27: #{tpu_custom_call.1} parent=1 // pred_check_branch
      %368 = sbr.rel (0) target = $region29
    $region28: #{tpu_custom_call.1} parent=1 // pred_region
      %370 = dma.done [#allocation4], 128
    $region29: #{tpu_custom_call.1} parent=1 // pred_fallthru
      _
    // Predicated region
    $region30: #{tpu_custom_call.1} parent=1 // pred_check
      _
    $region31: #{tpu_custom_call.1} parent=1 // pred_check_branch
      %372 = sbr.rel (0) target = $region33
    $region32: #{tpu_custom_call.1} parent=1 // pred_region
      %374 = dma.done [#allocation9], 128
    $region33: #{tpu_custom_call.1} parent=1 // pred_fallthru
      _
    %375 = vsyncpa [#allocation3], 1
    %376 = vsyncpa [#allocation4], 1
    %377 = vsyncpa [#allocation9], 1
    %378 = vsyncpa [#allocation5], 1

</llo_original>
